<compile_context>
chip_gen: v6e
topology: v6e:2x2x1
jax: 0.10.0
libtpu: 0.0.40
codegen_flags: <defaults>
</compile_context>

<pallas_src>
import functools

import jax
import jax.numpy as jnp
from jax.experimental import pallas as pl
from jax.experimental.pallas import tpu as pltpu


def _round_up(n: int, m: int) -> int:
    return ((n + m - 1) // m) * m


def _round_down(n: int, m: int) -> int:
    return (n // m) * m


def _probe_single_buffering() -> bool:
    """True iff pipeline_mode=pl.Buffered(1) compiles and runs end-to-end.

    Probed with a tiny kernel so a construction- or lowering-time rejection on
    this jax version can never break the real kernel (it just falls back to
    default double-buffering).
    """
    if not hasattr(pl, "Buffered"):
        return False
    try:
        def _probe(a_ref, o_ref):
            o_ref[...] = a_ref[...] * 2.0

        fn = pl.pallas_call(
            _probe,
            out_shape=jax.ShapeDtypeStruct((16, 128), jnp.float32),
            grid_spec=pltpu.PrefetchScalarGridSpec(
                num_scalar_prefetch=0,
                grid=(2,),
                in_specs=[pl.BlockSpec((8, 128), lambda i: (0, 0),
                                       pipeline_mode=pl.Buffered(1))],
                out_specs=pl.BlockSpec((8, 128), lambda i: (i, 0)),
            ),
        )
        jax.block_until_ready(fn(jnp.ones((8, 128), jnp.float32)))
        return True
    except Exception:
        return False


_SINGLE_BUFFER_OK = _probe_single_buffering()


def _invariant_spec(block_shape, index_map):
    """BlockSpec for a grid-invariant operand: single-buffered when supported
    (its index_map is constant, so there is nothing to pipeline)."""
    if _SINGLE_BUFFER_OK:
        return pl.BlockSpec(block_shape, index_map, pipeline_mode=pl.Buffered(1))
    return pl.BlockSpec(block_shape, index_map)


def _vmem_budget_bytes() -> int:
    """~85% of this generation's physical VMEM (v7x: 64 MiB, v5e/v6e: 128 MiB),
    leaving headroom for Mosaic internal scratch."""
    try:
        cap = int(pltpu.get_tpu_info().vmem_capacity_bytes)
    except Exception:
        cap = 64 * 1024 * 1024  # conservative fallback (v7x physical)
    return int(cap * 0.85)


def _choose_k_tile(D: int, w_itemsize: int, budget: int, max_tk) -> int:
    """K (contraction) tile: keep the whole weight resident (tk == D) unless
    its VMEM footprint is too large; otherwise the largest divisor of D that is
    a multiple of 128 and fits (K-raggedness would corrupt the accumulation,
    so tk must divide D exactly)."""
    limit = D if max_tk is None else max(128, min(max_tk, D))
    if D % 128 != 0:
        return D  # irregular d_model: no clean K-tiling, keep W resident
    cands = [t for t in range(128, D + 1, 128) if D % t == 0 and t <= limit]
    if not cands:
        cands = [128]
    for t in sorted(cands, reverse=True):
        bufs = 1 if (t == D and _SINGLE_BUFFER_OK) else 2
        if bufs * t * D * w_itemsize <= int(0.45 * budget):
            return t
    return cands[0]


def _sublayer_kernel(x_ref, w_ref, b_ref, g_ref, beta_ref, o_ref, *scratch,
                     nk: int, tk: int):
    """One (row-tile, K-tile) grid step of LayerNorm(x @ W + b + x).

    x_ref:  (TILE, TK)  native dtype (feeds the MXU directly)
    w_ref:  (TK, D)     native dtype
    b_ref, g_ref, beta_ref: (1, D)
    o_ref:  (TILE, D)
    scratch: (acc_ref,) f32 (TILE, D) accumulator, present only when nk > 1.
    """

    def _finalize(h):
        # h: (TILE, D) f32 = x @ W + x (residual already applied)
        h = h + b_ref[...].astype(jnp.float32)
        inv_d = 1.0 / h.shape[-1]
        # Two-pass mean/var: numerically safe for post-residual activations
        # (avoids the E[h^2]-mean^2 cancellation).
        mean = jnp.sum(h, axis=-1, keepdims=True) * inv_d
        centered = h - mean
        var = jnp.sum(centered * centered, axis=-1, keepdims=True) * inv_d
        inv_std = jax.lax.rsqrt(var + 1e-5)
        # Apply (TILE,1) inv_std first, then (1,D) gamma: one fewer (TILE,D)
        # live f32 value than folding them into a full-size scale.
        out = (centered * inv_std) * g_ref[...].astype(jnp.float32)
        out = out + beta_ref[...].astype(jnp.float32)
        o_ref[...] = out.astype(o_ref.dtype)

    x = x_ref[...]  # keep native dtype: bf16 operands feed the MXU directly

    if nk == 1:
        # Resident weight: single K step, no scratch round-trip needed.
        h = jnp.dot(x, w_ref[...], preferred_element_type=jnp.float32)
        _finalize(h + x.astype(jnp.float32))
    else:
        acc_ref = scratch[0]
        k = pl.program_id(1)

        @pl.when(k == 0)
        def _():
            acc_ref[...] = jnp.zeros_like(acc_ref)

        acc_ref[...] += jnp.dot(x, w_ref[...],
                                preferred_element_type=jnp.float32)

        # Residual: K-slice k of x corresponds to feature columns
        # [k*tk, (k+1)*tk) of h.  Unrolled pl.when keeps every VMEM slice
        # static (no dynamic lane offsets).
        xf = x.astype(jnp.float32)
        for kk in range(nk):
            @pl.when(k == kk)
            def _(kk=kk):
                acc_ref[:, kk * tk:(kk + 1) * tk] += xf

        @pl.when(k == nk - 1)
        def _():
            _finalize(acc_ref[...])


@functools.partial(jax.jit, static_argnames=("tile_rows", "max_tk"))
def sublayer_forward(x, w, b, gamma, beta, *, tile_rows=1024, max_tk=None):
    """Fused LayerNorm(x @ W + b + x).

    x: [B, S, D]; w: [D, D]; b, gamma, beta: [D].  Returns [B, S, D].
    `max_tk` is a testing knob that caps the K tile to force the K-tiled path.
    """
    B, S, D = x.shape
    rows = B * S
    in_item = jnp.dtype(x.dtype).itemsize
    w_item = jnp.dtype(w.dtype).itemsize
    out_item = in_item

    budget = _vmem_budget_bytes()

    # ---- K (contraction) tiling: resident weight unless it blows the budget.
    tk = _choose_k_tile(D, w_item, budget, max_tk)
    nk = D // tk
    if nk == 1:
        tk = D
    w_bufs = 1 if (nk == 1 and _SINGLE_BUFFER_OK) else 2

    # ---- Row tiling: solved from the per-generation VMEM budget. ----------
    sublane = max(8, 32 // in_item)          # f32: 8, bf16: 16, int8/fp8: 32
    rows_al = _round_up(rows, sublane)
    fixed = w_bufs * tk * D * w_item + 6 * D * 4          # weight + params
    per_row = (2 * tk * in_item              # double-buffered x row blocks
               + 2 * D * out_item            # double-buffered output blocks
               + 2 * D * 4)                  # f32 h / accumulator + LN temp
    tile_cap = max(sublane, (budget - fixed) // per_row)
    tile = min(_round_up(tile_rows, sublane), rows_al,
               max(sublane, _round_down(tile_cap, sublane)))
    if tile >= 256:
        tile = _round_down(tile, 256)        # full MXU pass on v6e/v7x
    # v7x megacore: give the "parallel" row axis >= 2 steps when rows allow so
    # both TensorCores get work (one cheap extra step on 1-TC chips).
    if pl.cdiv(rows, tile) < 2 and rows_al >= 2 * sublane:
        tile = _round_up(pl.cdiv(rows, 2), sublane)
    tile = max(tile, sublane)

    # Ragged last row block: OOB reads only affect rows whose writes Pallas
    # drops (LayerNorm is strictly per-row), so no padding / output slice.
    grid = (pl.cdiv(rows, tile), nk)

    # ---- Operands & specs --------------------------------------------------
    x2 = x.reshape(rows, D)                  # metadata only; no HBM copy
    b2 = b.reshape(1, D)
    g2 = gamma.reshape(1, D)
    beta2 = beta.reshape(1, D)

    x_spec = pl.BlockSpec((tile, tk), lambda i, k: (i, k))
    if nk == 1:
        w_spec = _invariant_spec((tk, D), lambda i, k: (0, 0))
    else:
        w_spec = pl.BlockSpec((tk, D), lambda i, k: (k, 0))
    b_spec = _invariant_spec((1, D), lambda i, k: (0, 0))
    g_spec = _invariant_spec((1, D), lambda i, k: (0, 0))
    beta_spec = _invariant_spec((1, D), lambda i, k: (0, 0))
    out_spec = pl.BlockSpec((tile, D), lambda i, k: (i, 0))

    scratch_shapes = [] if nk == 1 else [pltpu.VMEM((tile, D), jnp.float32)]

    # ---- VMEM limit & cost hint --------------------------------------------
    acc_bytes = 0 if nk == 1 else tile * D * 4
    est = (w_bufs * tk * D * w_item
           + 2 * tile * tk * in_item
           + 2 * tile * D * out_item
           + acc_bytes + 2 * tile * D * 4    # f32 h / LN temporaries
           + 6 * D * 4)
    vmem_limit = int(min(max(int(1.25 * est), 32 * 1024 * 1024), budget))

    cost = pl.CostEstimate(
        flops=2 * rows * D * D + 8 * rows * D,
        transcendentals=rows,
        bytes_accessed=rows * D * (in_item + out_item)
        + D * D * w_item + 3 * D * 4,
    )

    out = pl.pallas_call(
        functools.partial(_sublayer_kernel, nk=nk, tk=tk),
        out_shape=jax.ShapeDtypeStruct((rows, D), x.dtype),
        grid_spec=pltpu.PrefetchScalarGridSpec(
            num_scalar_prefetch=0,
            grid=grid,
            in_specs=[x_spec, w_spec, b_spec, g_spec, beta_spec],
            out_specs=out_spec,
            scratch_shapes=scratch_shapes,
        ),
        compiler_params=pltpu.CompilerParams(
            dimension_semantics=("parallel", "arbitrary"),
            vmem_limit_bytes=vmem_limit,
        ),
        cost_estimate=cost,
    )(x2, w, b2, g2, beta2)

    return out.reshape(B, S, D)


def sublayer_reference(x, w, b, gamma, beta):
    """Pure-JAX reference matching the PyTorch semantics."""
    h = jnp.einsum("bsd,de->bse", x, w) + b
    h = h + x
    mean = jnp.mean(h, axis=-1, keepdims=True)
    var = jnp.mean((h - mean) ** 2, axis=-1, keepdims=True)
    normed = (h - mean) / jnp.sqrt(var + 1e-5)
    return normed * gamma + beta


if __name__ == "__main__":
    B, S, D = 2, 8, 128  # batch, seq, d_model

    key = jax.random.PRNGKey(0)
    kx, kw, kb, kg, kbeta = jax.random.split(key, 5)

    x = jax.random.normal(kx, (B, S, D), dtype=jnp.float32)
    # Deterministic synthetic params (sublayer = Linear(D, D); LayerNorm affine).
    w = jax.random.normal(kw, (D, D), dtype=jnp.float32) * (1.0 / jnp.sqrt(D))
    b = jax.random.normal(kb, (D,), dtype=jnp.float32) * 0.02
    gamma = 1.0 + 0.1 * jax.random.normal(kg, (D,), dtype=jnp.float32)
    beta = 0.1 * jax.random.normal(kbeta, (D,), dtype=jnp.float32)

    # --- f32 path (resident weight, single K step) ---
    out = jax.block_until_ready(sublayer_forward(x, w, b, gamma, beta))
    ref = sublayer_reference(x, w, b, gamma, beta)
    assert jnp.allclose(out, ref, atol=1e-4, rtol=1e-4), "f32 mismatch vs reference"

    # --- ragged rows (rows not a multiple of the tile / sublane) ---
    x_odd = jax.random.normal(kx, (3, 5, D), dtype=jnp.float32)
    out_odd = jax.block_until_ready(sublayer_forward(x_odd, w, b, gamma, beta))
    ref_odd = sublayer_reference(x_odd, w, b, gamma, beta)
    assert jnp.allclose(out_odd, ref_odd, atol=1e-4, rtol=1e-4), "ragged-rows mismatch"

    # --- bf16 path: operands feed the MXU natively, LN tail stays f32 ---
    xb = x.astype(jnp.bfloat16)
    wb = w.astype(jnp.bfloat16)
    bb = b.astype(jnp.bfloat16)
    out_bf16 = jax.block_until_ready(sublayer_forward(xb, wb, bb, gamma, beta))
    ref_bf16 = sublayer_reference(
        xb.astype(jnp.float32), wb.astype(jnp.float32), bb.astype(jnp.float32),
        gamma, beta)
    assert jnp.allclose(out_bf16.astype(jnp.float32), ref_bf16,
                        atol=5e-2, rtol=5e-2), "bf16 mismatch vs reference"

    # --- K-tiled path (forced small K tile: accumulator + init/finalize) ---
    D2 = 256
    kx2, kw2, kb2, kg2, kbeta2 = jax.random.split(jax.random.PRNGKey(1), 5)
    x_k = jax.random.normal(kx2, (2, 8, D2), dtype=jnp.float32)
    w_k = jax.random.normal(kw2, (D2, D2), dtype=jnp.float32) * (1.0 / jnp.sqrt(D2))
    b_k = 0.02 * jax.random.normal(kb2, (D2,), dtype=jnp.float32)
    g_k = 1.0 + 0.1 * jax.random.normal(kg2, (D2,), dtype=jnp.float32)
    beta_k = 0.1 * jax.random.normal(kbeta2, (D2,), dtype=jnp.float32)
    out_k = jax.block_until_ready(
        sublayer_forward(x_k, w_k, b_k, g_k, beta_k, max_tk=128))
    ref_k = sublayer_reference(x_k, w_k, b_k, g_k, beta_k)
    assert jnp.allclose(out_k, ref_k, atol=1e-3, rtol=1e-3), "K-tiled path mismatch"

    print("KERNEL_OK")
</pallas_src>

<mosaic_0001>
module attributes {stable_mosaic.version = 11 : i64} {
  func.func @_probe(%arg0: i32, %arg1: memref<8x128xf32, #tpu.memory_space<vmem>>, %arg2: memref<8x128xf32, #tpu.memory_space<vmem>>) attributes {dimension_semantics = [#tpu.dimension_semantics<arbitrary>], iteration_bounds = array<i64: 2>, scalar_prefetch = 0 : i64, scratch_operands = 0 : i64, tpu.core_type = #tpu.core_type<tc>, window_params = [{pipeline_mode = #tpu.pipeline_mode<synchronous>, transform_indices = @transform_0, window_bounds = array<i64: 8, 128>}, {transform_indices = @transform_1, window_bounds = array<i64: 8, 128>}]} {
    %c0 = arith.constant 0 : index
    %c0_0 = arith.constant 0 : index
    %0 = vector.load %arg1[%c0, %c0_0] : memref<8x128xf32, #tpu.memory_space<vmem>>, vector<8x128xf32>
    %cst = arith.constant 2.000000e+00 : f32
    %1 = vector.broadcast %cst : f32 to vector<8x128xf32>
    %2 = arith.mulf %0, %1 : vector<8x128xf32>
    %c0_1 = arith.constant 0 : index
    %c0_2 = arith.constant 0 : index
    %3 = vector.load %arg2[%c0_1, %c0_2] : memref<8x128xf32, #tpu.memory_space<vmem>>, vector<8x128xf32>
    tpu.vector_store %arg2[%c0_1, %c0_2], %2 {strides = array<i32>} : memref<8x128xf32, #tpu.memory_space<vmem>>, vector<8x128xf32>,
    return
  }
  func.func @transform_0(%arg0: i32) -> (i32, i32) {
    %c0_i32 = arith.constant 0 : i32
    %c0_i32_0 = arith.constant 0 : i32
    %c0_i32_1 = arith.constant 0 : i32
    return %c0_i32, %c0_i32_0 : i32, i32
  }
  func.func @transform_1(%arg0: i32) -> (i32, i32) {
    %c0_i32 = arith.constant 0 : i32
    %c0_i32_0 = arith.constant 0 : i32
    return %arg0, %c0_i32 : i32, i32
  }
}

module attributes {stable_mosaic.version = 11 : i64} {
  func.func @_sublayer_kernel(%arg0: i32, %arg1: i32, %arg2: memref<8x128xf32, #tpu.memory_space<vmem>>, %arg3: memref<128x128xf32, #tpu.memory_space<vmem>>, %arg4: memref<1x128xf32, #tpu.memory_space<vmem>>, %arg5: memref<1x128xf32, #tpu.memory_space<vmem>>, %arg6: memref<1x128xf32, #tpu.memory_space<vmem>>, %arg7: memref<8x128xf32, #tpu.memory_space<vmem>>) attributes {dimension_semantics = [#tpu.dimension_semantics<parallel>, #tpu.dimension_semantics<arbitrary>], iteration_bounds = array<i64: 2, 1>, scalar_prefetch = 0 : i64, scratch_operands = 0 : i64, tpu.core_type = #tpu.core_type<tc>, window_params = [{transform_indices = @transform_0, window_bounds = array<i64: 8, 128>}, {pipeline_mode = #tpu.pipeline_mode<synchronous>, transform_indices = @transform_1, window_bounds = array<i64: 128, 128>}, {pipeline_mode = #tpu.pipeline_mode<synchronous>, transform_indices = @transform_2, window_bounds = array<i64: 1, 128>}, {pipeline_mode = #tpu.pipeline_mode<synchronous>, transform_indices = @transform_3, window_bounds = array<i64: 1, 128>}, {pipeline_mode = #tpu.pipeline_mode<synchronous>, transform_indices = @transform_4, window_bounds = array<i64: 1, 128>}, {transform_indices = @transform_5, window_bounds = array<i64: 8, 128>}]} {
    %c0 = arith.constant 0 : index
    %c0_0 = arith.constant 0 : index
    %0 = vector.load %arg2[%c0, %c0_0] : memref<8x128xf32, #tpu.memory_space<vmem>>, vector<8x128xf32>
    %c0_1 = arith.constant 0 : index
    %c0_2 = arith.constant 0 : index
    %1 = vector.load %arg3[%c0_1, %c0_2] : memref<128x128xf32, #tpu.memory_space<vmem>>, vector<128x128xf32>
    %cst = arith.constant dense<0.000000e+00> : vector<8x128xf32>
    %2 = tpu.matmul %0, %1, %cst {dimension_numbers = #tpu.dot_dimension_numbers<[1], [0], [0], [1], [0, 0, 1, 1], [], []>} : vector<8x128xf32>, vector<128x128xf32>, vector<8x128xf32> -> vector<8x128xf32>
    %3 = arith.addf %2, %0 : vector<8x128xf32>
    %c0_3 = arith.constant 0 : index
    %c0_4 = arith.constant 0 : index
    %4 = vector.load %arg4[%c0_3, %c0_4] : memref<1x128xf32, #tpu.memory_space<vmem>>, vector<1x128xf32>
    %5 = vector.broadcast %4 : vector<1x128xf32> to vector<8x128xf32>
    %6 = arith.addf %3, %5 : vector<8x128xf32>
    %cst_5 = arith.constant dense<0.000000e+00> : vector<8xf32>
    %7 = vector.multi_reduction <add>, %6, %cst_5 [1] : vector<8x128xf32> to vector<8xf32>
    %8 = vector.shape_cast %7 : vector<8xf32> to vector<8x1xf32>
    %cst_6 = arith.constant 7.812500e-03 : f32
    %9 = vector.broadcast %cst_6 : f32 to vector<8x1xf32>
    %10 = arith.mulf %8, %9 : vector<8x1xf32>
    %11 = vector.broadcast %10 : vector<8x1xf32> to vector<8x128xf32>
    %12 = arith.subf %6, %11 : vector<8x128xf32>
    %13 = arith.mulf %12, %12 : vector<8x128xf32>
    %cst_7 = arith.constant dense<0.000000e+00> : vector<8xf32>
    %14 = vector.multi_reduction <add>, %13, %cst_7 [1] : vector<8x128xf32> to vector<8xf32>
    %15 = vector.shape_cast %14 : vector<8xf32> to vector<8x1xf32>
    %cst_8 = arith.constant 7.812500e-03 : f32
    %16 = vector.broadcast %cst_8 : f32 to vector<8x1xf32>
    %17 = arith.mulf %15, %16 : vector<8x1xf32>
    %cst_9 = arith.constant 9.99999974E-6 : f32
    %18 = vector.broadcast %cst_9 : f32 to vector<8x1xf32>
    %19 = arith.addf %17, %18 : vector<8x1xf32>
    %20 = math.rsqrt %19 : vector<8x1xf32>
    %21 = vector.broadcast %20 : vector<8x1xf32> to vector<8x128xf32>
    %22 = arith.mulf %12, %21 : vector<8x128xf32>
    %c0_10 = arith.constant 0 : index
    %c0_11 = arith.constant 0 : index
    %23 = vector.load %arg5[%c0_10, %c0_11] : memref<1x128xf32, #tpu.memory_space<vmem>>, vector<1x128xf32>
    %24 = vector.broadcast %23 : vector<1x128xf32> to vector<8x128xf32>
    %25 = arith.mulf %22, %24 : vector<8x128xf32>
    %c0_12 = arith.constant 0 : index
    %c0_13 = arith.constant 0 : index
    %26 = vector.load %arg6[%c0_12, %c0_13] : memref<1x128xf32, #tpu.memory_space<vmem>>, vector<1x128xf32>
    %27 = vector.broadcast %26 : vector<1x128xf32> to vector<8x128xf32>
    %28 = arith.addf %25, %27 : vector<8x128xf32>
    %c0_14 = arith.constant 0 : index
    %c0_15 = arith.constant 0 : index
    %29 = vector.load %arg7[%c0_14, %c0_15] : memref<8x128xf32, #tpu.memory_space<vmem>>, vector<8x128xf32>
    tpu.vector_store %arg7[%c0_14, %c0_15], %28 {strides = array<i32>} : memref<8x128xf32, #tpu.memory_space<vmem>>, vector<8x128xf32>,
    return
  }
  func.func @transform_0(%arg0: i32, %arg1: i32) -> (i32, i32) {
    %c0_i32 = arith.constant 0 : i32
    return %arg0, %arg1 : i32, i32
  }
  func.func @transform_1(%arg0: i32, %arg1: i32) -> (i32, i32) {
    %c0_i32 = arith.constant 0 : i32
    %c0_i32_0 = arith.constant 0 : i32
    %c0_i32_1 = arith.constant 0 : i32
    return %c0_i32, %c0_i32_0 : i32, i32
  }
  func.func @transform_2(%arg0: i32, %arg1: i32) -> (i32, i32) {
    %c0_i32 = arith.constant 0 : i32
    %c0_i32_0 = arith.constant 0 : i32
    %c0_i32_1 = arith.constant 0 : i32
    return %c0_i32, %c0_i32_0 : i32, i32
  }
  func.func @transform_3(%arg0: i32, %arg1: i32) -> (i32, i32) {
    %c0_i32 = arith.constant 0 : i32
    %c0_i32_0 = arith.constant 0 : i32
    %c0_i32_1 = arith.constant 0 : i32
    return %c0_i32, %c0_i32_0 : i32, i32
  }
  func.func @transform_4(%arg0: i32, %arg1: i32) -> (i32, i32) {
    %c0_i32 = arith.constant 0 : i32
    %c0_i32_0 = arith.constant 0 : i32
    %c0_i32_1 = arith.constant 0 : i32
    return %c0_i32, %c0_i32_0 : i32, i32
  }
  func.func @transform_5(%arg0: i32, %arg1: i32) -> (i32, i32) {
    %c0_i32 = arith.constant 0 : i32
    %c0_i32_0 = arith.constant 0 : i32
    return %arg0, %c0_i32 : i32, i32
  }
}

</mosaic_0001>

<llo_original>
// kernel: tpu_custom_call.1
$region0: #{tpu_custom_call.1}
  #allocation0 [shape = 'u32[]', space=smem, size = 0x4, offset = 0x4, fixed_abs, tag = 'smem constant byte address 0x4 - core index']
  #allocation1 [shape = 'u32[144,128]{1,0:T(1,128)}', space=vmem, size = 0x12000, scoped, tag = 'internal scratch']
  %s0 = inlined_call_operand.hbm [shape: f32[8,128], index: 0, kind: input, shape index: {}]
  %s1 = inlined_call_operand.hbm [shape: f32[16,128], index: 1, kind: output, shape index: {}]
  %s2 = sld [smem:[#allocation0]]
  $region41: #{tpu_custom_call.1} parent=0
    _
  %s4 = ssub.s32 1, %s2
  %s5 = scalar_select 0, %s4, %s2
  $region1: #{tpu_custom_call.1} parent=0
    #allocation2 [shape = 'u8[4096]{0}', space=vmem, size = 0x1000, scoped, tag = 'input window, operand 0, single buffered']
    #allocation3 [shape = 's32[2]{0}', space=sflag, size = 0x8, scoped, tag = 'scoped memory for tpu_custom_call.1']
    #allocation4 [shape = 's32[2]{0}', space=sflag, size = 0x8, scoped, tag = 'scoped memory for tpu_custom_call.1']
    #allocation5 [shape = 'u8[8192]{0}', space=vmem, size = 0x2000, scoped, tag = 'output window, operand 0']
    %6 = vsyncpa [#allocation3], 0
    %7 = vsyncpa [#allocation4], 0
    %s8 = scalar_lea.sflag [#allocation4], 1
    %9 = vsyncpa %s8, 0
    loop: start=0, step=1, limit=4
    $region2: #{tpu_custom_call.1} parent=1 // loop_pre_header
      _
    $region3: #{tpu_custom_call.1} parent=1 // loop_header
      %s11 = sphi 0, %s15
      %p12 = scmp.ge.s32.totalorder %s11, 4
      %s19 = sphi 0, %s19
      %s21 = sphi 0, %s19
      %s22 = sphi 0, %s21
      %s36 = sphi 0, %s22
      %s42 = sphi 0, %s44
      %s45 = sphi 0, %s42
      %s46 = sphi 0, %s45
      %s62 = sphi 0, %s46
    $region4: #{tpu_custom_call.1} parent=1 // loop_header_branch
      %14 = sbr.rel (%p12) target = $region8
    $region5: #{tpu_custom_call.1} parent=1 // loop_body
      %s16 = ssub.s32 %s11, 1
      %s17 = ssub.s32 %s11, 2
      %s18 = sadd.s32 %s11, 1
      %s20 = sadd.s32 %s19, 1
      %p23 = scmp.eq.s32.totalorder %s11, 1
      %p24 = scmp.ne.s32.totalorder %s19, %s21
      %p25 = scmp.eq.s32.totalorder %s11, 0
      %p26 = por %p24, %p25
      %p27 = scmp.ne.s32.totalorder %s19, %s21
      %p28 = scmp.eq.s32.totalorder %s16, 1
      %p29 = por %p27, %p28
      %p30 = scmp.ne.s32.totalorder %s21, %s22
      %p31 = scmp.eq.s32.totalorder %s16, 0
      %p32 = por %p30, %p31
      %p33 = scmp.ne.s32.totalorder %s21, %s22
      %p34 = scmp.eq.s32.totalorder %s17, 1
      %p35 = por %p33, %p34
      %p37 = scmp.ne.s32.totalorder %s22, %s36
      %p38 = scmp.eq.s32.totalorder %s17, 0
      %p39 = por %p37, %p38
      %s40 = ssub.s32 %s11, %s18
      %p41 = scmp.eq.s32.totalorder %s40, 0
      %s43 = sadd.s32 %s42, 1
      %s44 = scalar_select %p41, %s42, %s43
      %p47 = pneg %p41
      %p48 = scmp.eq.s32.totalorder %s11, 1
      %p49 = por %p47, %p48
      %p50 = scmp.ne.s32.totalorder %s42, %s45
      %p51 = scmp.eq.s32.totalorder %s11, 0
      %p52 = por %p50, %p51
      %p53 = scmp.ne.s32.totalorder %s42, %s45
      %p54 = scmp.eq.s32.totalorder %s16, 1
      %p55 = por %p53, %p54
      %p56 = scmp.ne.s32.totalorder %s45, %s46
      %p57 = scmp.eq.s32.totalorder %s16, 0
      %p58 = por %p56, %p57
      %p59 = scmp.ne.s32.totalorder %s45, %s46
      %p60 = scmp.eq.s32.totalorder %s17, 1
      %p61 = por %p59, %p60
      %p63 = scmp.ne.s32.totalorder %s46, %s62
      %p64 = scmp.eq.s32.totalorder %s17, 0
      %p65 = por %p63, %p64
      %p66 = scmp.le.s32.totalorder 1, %s11
      %p67 = scmp.lt.s32.totalorder %s11, 3
      %p68 = pnand %p66, %p67
      %p69 = pneg %p68
      // Predicated region
      $region9: #{tpu_custom_call.1} parent=5 // pred_check
        _
      $region10: #{tpu_custom_call.1} parent=5 // pred_check_branch
        %71 = sbr.rel (%p68) target = $region12
      $region11: #{tpu_custom_call.1} parent=5 // pred_region
        %s72 = ssub.s32 %s11, 1
        // Predicated region
        $region13: #{tpu_custom_call.1} parent=11 // pred_check
          %p73 = pneg %p32
        $region14: #{tpu_custom_call.1} parent=11 // pred_check_branch
          %75 = sbr.rel (%p73) target = $region16
        $region15: #{tpu_custom_call.1} parent=11 // pred_region
          %s77 = ssub.s32 128, 128
          %78 = vsyncadd [#allocation3], %s77
          %s80 = sshll.u32 [#allocation2], 4
          %s81 = int_to_ptr.vmem [resolvable:$true] %s80
          %83 = dma.hbm_to_vmem [thread:$0]  %s0, 128, %s81, [#allocation3]
        $region16: #{tpu_custom_call.1} parent=11 // pred_fallthru
          _
      $region12: #{tpu_custom_call.1} parent=5 // pred_fallthru
        _
      %p84 = scmp.lt.s32.totalorder %s11, 2
      // Predicated region
      $region17: #{tpu_custom_call.1} parent=5 // pred_check
        %p85 = pneg %p84
      $region18: #{tpu_custom_call.1} parent=5 // pred_check_branch
        %87 = sbr.rel (%p85) target = $region20
      $region19: #{tpu_custom_call.1} parent=5 // pred_region
        _
      $region20: #{tpu_custom_call.1} parent=5 // pred_fallthru
        _
      %p88 = scmp.le.s32.totalorder 1, %s11
      %p89 = scmp.lt.s32.totalorder %s11, 3
      %p90 = pnand %p88, %p89
      %p91 = pneg %p90
      // Predicated region
      $region21: #{tpu_custom_call.1} parent=5 // pred_check
        _
      $region22: #{tpu_custom_call.1} parent=5 // pred_check_branch
        %93 = sbr.rel (%p90) target = $region24
      $region23: #{tpu_custom_call.1} parent=5 // pred_region
        %s94 = ssub.s32 %s11, 1
        // Predicated region
        $region25: #{tpu_custom_call.1} parent=23 // pred_check
          %p95 = pneg %p32
        $region26: #{tpu_custom_call.1} parent=23 // pred_check_branch
          %97 = sbr.rel (%p95) target = $region28
        $region27: #{tpu_custom_call.1} parent=23 // pred_region
          %98 = dma.done [#allocation3], 128
        $region28: #{tpu_custom_call.1} parent=23 // pred_fallthru
          _
        %p99 = pneg %p32
        %p100 = pneg %p29
        %p101 = pneg %p58
        %p102 = pneg %p55
        %s103 = sand.u32 %s45, 1
        %s104 = scalar_lea.sflag [#allocation4], %s103
        %s105 = sand.u32 %s45, 1
        %s106 = smul.addr %s105, 8
        %s107 = scalar_lea.vmem [#allocation5], %s106
        %v108 = vld [vmem:[#allocation2] sm:$0xff]
        %v109 = vmul.f32 %v108, 2.0
        %110 = vst [vmem:[%s107] sm:$0xff] %v109
        %s111 = sand.u32 %s45, 1
        %s112 = scalar_lea.sflag [#allocation4], %s111
        %s113 = sand.u32 %s45, 1
        %s114 = smul.addr %s113, 8
        %s115 = scalar_lea.vmem [#allocation5], %s114
        // Predicated region
        $region29: #{tpu_custom_call.1} parent=23 // pred_check
          %p116 = pneg %p55
        $region30: #{tpu_custom_call.1} parent=23 // pred_check_branch
          %118 = sbr.rel (%p116) target = $region32
        $region31: #{tpu_custom_call.1} parent=23 // pred_region
          %s120 = ssub.s32 128, 128
          %121 = vsyncadd %s112, %s120
          %s122 = smul.addr %s16, 128
          %s123 = scalar_lea.hbm %s1, %s122
          %s125 = sshll.u32 %s115, 4
          %s126 = int_to_ptr.vmem [resolvable:$true] %s125
          %128 = dma.vmem_to_hbm [thread:$0]  %s126, 128, %s123, %s112
        $region32: #{tpu_custom_call.1} parent=23 // pred_fallthru
          _
      $region24: #{tpu_custom_call.1} parent=5 // pred_fallthru
        _
      %p129 = scmp.le.s32.totalorder 2, %s11
      // Predicated region
      $region33: #{tpu_custom_call.1} parent=5 // pred_check
        %p130 = pneg %p129
      $region34: #{tpu_custom_call.1} parent=5 // pred_check_branch
        %132 = sbr.rel (%p130) target = $region36
      $region35: #{tpu_custom_call.1} parent=5 // pred_region
        %s133 = ssub.s32 %s11, 2
        // Predicated region
        $region37: #{tpu_custom_call.1} parent=35 // pred_check
          %p134 = pneg %p61
        $region38: #{tpu_custom_call.1} parent=35 // pred_check_branch
          %136 = sbr.rel (%p134) target = $region40
        $region39: #{tpu_custom_call.1} parent=35 // pred_region
          %s137 = sand.u32 %s46, 1
          %s138 = scalar_lea.sflag [#allocation4], %s137
          %s139 = sand.u32 %s46, 1
          %s140 = smul.addr %s139, 8
          %s141 = scalar_lea.vmem [#allocation5], %s140
          %142 = dma.done %s138, 128
        $region40: #{tpu_custom_call.1} parent=35 // pred_fallthru
          _
      $region36: #{tpu_custom_call.1} parent=5 // pred_fallthru
        _
    $region6: #{tpu_custom_call.1} parent=1 // loop_footer
      %s15 = sadd.s32 1, %s11
    $region7: #{tpu_custom_call.1} parent=1 // loop_footer_branch
      %10 = sbr.rel target = $region3
    $region8: #{tpu_custom_call.1} parent=1 // loop_exit
      _
    %143 = vsyncpa [#allocation3], 1
    %s144 = scalar_lea.sflag [#allocation3], 1
    %145 = vsyncpa %s144, 1
    %146 = vsyncpa [#allocation4], 1
    %s147 = scalar_lea.sflag [#allocation4], 1
    %148 = vsyncpa %s147, 1

// kernel: sublayer_forward.1
$region0: #{sublayer_forward.1}
  #allocation0 [shape = 'u32[]', space=smem, size = 0x4, offset = 0x4, fixed_abs, tag = 'smem constant byte address 0x4 - core index']
  #allocation1 [shape = 'u32[144,128]{1,0:T(1,128)}', space=vmem, size = 0x12000, scoped, tag = 'internal scratch']
  %s0 = inlined_call_operand.hbm [shape: f32[16,128], index: 0, kind: input, shape index: {}]
  %s1 = inlined_call_operand.hbm [shape: f32[128,128], index: 1, kind: input, shape index: {}]
  %s2 = inlined_call_operand.vmem [shape: f32[1,128], index: 2, kind: input, shape index: {}]
  %s3 = inlined_call_operand.vmem [shape: f32[1,128], index: 3, kind: input, shape index: {}]
  %s4 = inlined_call_operand.vmem [shape: f32[1,128], index: 4, kind: input, shape index: {}]
  %s5 = inlined_call_operand.hbm [shape: f32[16,128], index: 5, kind: output, shape index: {}]
  %s6 = sld [smem:[#allocation0]]
  $region61: #{sublayer_forward.1} parent=0
    _
  %s8 = ssub.s32 1, %s6
  %s9 = scalar_select 0, %s8, %s6
  $region1: #{sublayer_forward.1} parent=0
    #allocation2 [shape = 'u8[8192]{0}', space=vmem, size = 0x2000, scoped, tag = 'input window, operand 0']
    #allocation3 [shape = 's32[2]{0}', space=sflag, size = 0x8, scoped, tag = 'scoped memory for sublayer_forward.1']
    #allocation4 [shape = 's32[2]{0}', space=sflag, size = 0x8, scoped, tag = 'scoped memory for sublayer_forward.1']
    #allocation5 [shape = 'u8[65536]{0}', space=vmem, size = 0x10000, scoped, tag = 'input window, operand 1, single buffered']
    #allocation6 [shape = 's32[1]{0}', space=sflag, size = 0x4, scoped, tag = 'scoped memory for sublayer_forward.1']
    #allocation7 [shape = 'u8[8192]{0}', space=vmem, size = 0x2000, scoped, tag = 'output window, operand 0']
    %10 = vsyncpa [#allocation3], 0
    %s11 = scalar_lea.sflag [#allocation3], 1
    %12 = vsyncpa %s11, 0
    %13 = vsyncpa [#allocation6], 0
    %14 = vsyncpa [#allocation4], 0
    %s15 = scalar_lea.sflag [#allocation4], 1
    %16 = vsyncpa %s15, 0
    loop: start=0, step=1, limit=4
    $region2: #{sublayer_forward.1} parent=1 // loop_pre_header
      _
    $region3: #{sublayer_forward.1} parent=1 // loop_header
      %s18 = sphi 0, %s22
      %p19 = scmp.ge.s32.totalorder %s18, 4
      %s25 = sphi 0, %s37
      %s26 = sphi 0, %s33
      %s27 = sphi 0, %s25
      %s28 = sphi 0, %s26
      %s29 = sphi 0, %s27
      %s30 = sphi 0, %s28
      %s42 = sphi 0, %s44
      %s45 = sphi 0, %s42
      %s46 = sphi 0, %s45
      %s62 = sphi 0, %s46
      %s66 = sphi 0, %s66
      %s68 = sphi 0, %s66
      %s69 = sphi 0, %s68
      %s83 = sphi 0, %s69
      %s87 = sphi 0, %s87
      %s89 = sphi 0, %s87
      %s90 = sphi 0, %s89
      %s104 = sphi 0, %s90
      %s108 = sphi 0, %s108
      %s110 = sphi 0, %s108
      %s111 = sphi 0, %s110
      %s125 = sphi 0, %s111
      %s129 = sphi 0, %s129
      %s131 = sphi 0, %s129
      %s132 = sphi 0, %s131
      %s146 = sphi 0, %s132
      %s152 = sphi 0, %s154
      %s155 = sphi 0, %s152
      %s156 = sphi 0, %s155
      %s172 = sphi 0, %s156
    $region4: #{sublayer_forward.1} parent=1 // loop_header_branch
      %21 = sbr.rel (%p19) target = $region8
    $region5: #{sublayer_forward.1} parent=1 // loop_body
      %s23 = ssub.s32 %s18, 1
      %s24 = ssub.s32 %s18, 2
      %s31 = sadd.s32 1, %s26
      %p32 = scmp.ge.s32.totalorder %s31, 1
      %s33 = scalar_select %p32, 0, %s31
      %s34 = sadd.s32 1, %s25
      %s35 = scalar_select %p32, %s34, %s25
      %p36 = scmp.ge.s32.totalorder %s35, 2
      %s37 = scalar_select %p36, 0, %s35
      %s38 = ssub.s32 %s25, %s37
      %s39 = ssub.s32 %s26, %s33
      %s40 = sor.u32 %s38, %s39
      %p41 = scmp.eq.s32.totalorder %s40, 0
      %s43 = sadd.s32 %s42, 1
      %s44 = scalar_select %p41, %s42, %s43
      %p47 = pneg %p41
      %p48 = scmp.eq.s32.totalorder %s18, 1
      %p49 = por %p47, %p48
      %p50 = scmp.ne.s32.totalorder %s42, %s45
      %p51 = scmp.eq.s32.totalorder %s18, 0
      %p52 = por %p50, %p51
      %p53 = scmp.ne.s32.totalorder %s42, %s45
      %p54 = scmp.eq.s32.totalorder %s23, 1
      %p55 = por %p53, %p54
      %p56 = scmp.ne.s32.totalorder %s45, %s46
      %p57 = scmp.eq.s32.totalorder %s23, 0
      %p58 = por %p56, %p57
      %p59 = scmp.ne.s32.totalorder %s45, %s46
      %p60 = scmp.eq.s32.totalorder %s24, 1
      %p61 = por %p59, %p60
      %p63 = scmp.ne.s32.totalorder %s46, %s62
      %p64 = scmp.eq.s32.totalorder %s24, 0
      %p65 = por %p63, %p64
      %s67 = sadd.s32 %s66, 1
      %p70 = scmp.eq.s32.totalorder %s18, 1
      %p71 = scmp.ne.s32.totalorder %s66, %s68
      %p72 = scmp.eq.s32.totalorder %s18, 0
      %p73 = por %p71, %p72
      %p74 = scmp.ne.s32.totalorder %s66, %s68
      %p75 = scmp.eq.s32.totalorder %s23, 1
      %p76 = por %p74, %p75
      %p77 = scmp.ne.s32.totalorder %s68, %s69
      %p78 = scmp.eq.s32.totalorder %s23, 0
      %p79 = por %p77, %p78
      %p80 = scmp.ne.s32.totalorder %s68, %s69
      %p81 = scmp.eq.s32.totalorder %s24, 1
      %p82 = por %p80, %p81
      %p84 = scmp.ne.s32.totalorder %s69, %s83
      %p85 = scmp.eq.s32.totalorder %s24, 0
      %p86 = por %p84, %p85
      %s88 = sadd.s32 %s87, 1
      %p91 = scmp.eq.s32.totalorder %s18, 1
      %p92 = scmp.ne.s32.totalorder %s87, %s89
      %p93 = scmp.eq.s32.totalorder %s18, 0
      %p94 = por %p92, %p93
      %p95 = scmp.ne.s32.totalorder %s87, %s89
      %p96 = scmp.eq.s32.totalorder %s23, 1
      %p97 = por %p95, %p96
      %p98 = scmp.ne.s32.totalorder %s89, %s90
      %p99 = scmp.eq.s32.totalorder %s23, 0
      %p100 = por %p98, %p99
      %p101 = scmp.ne.s32.totalorder %s89, %s90
      %p102 = scmp.eq.s32.totalorder %s24, 1
      %p103 = por %p101, %p102
      %p105 = scmp.ne.s32.totalorder %s90, %s104
      %p106 = scmp.eq.s32.totalorder %s24, 0
      %p107 = por %p105, %p106
      %s109 = sadd.s32 %s108, 1
      %p112 = scmp.eq.s32.totalorder %s18, 1
      %p113 = scmp.ne.s32.totalorder %s108, %s110
      %p114 = scmp.eq.s32.totalorder %s18, 0
      %p115 = por %p113, %p114
      %p116 = scmp.ne.s32.totalorder %s108, %s110
      %p117 = scmp.eq.s32.totalorder %s23, 1
      %p118 = por %p116, %p117
      %p119 = scmp.ne.s32.totalorder %s110, %s111
      %p120 = scmp.eq.s32.totalorder %s23, 0
      %p121 = por %p119, %p120
      %p122 = scmp.ne.s32.totalorder %s110, %s111
      %p123 = scmp.eq.s32.totalorder %s24, 1
      %p124 = por %p122, %p123
      %p126 = scmp.ne.s32.totalorder %s111, %s125
      %p127 = scmp.eq.s32.totalorder %s24, 0
      %p128 = por %p126, %p127
      %s130 = sadd.s32 %s129, 1
      %p133 = scmp.eq.s32.totalorder %s18, 1
      %p134 = scmp.ne.s32.totalorder %s129, %s131
      %p135 = scmp.eq.s32.totalorder %s18, 0
      %p136 = por %p134, %p135
      %p137 = scmp.ne.s32.totalorder %s129, %s131
      %p138 = scmp.eq.s32.totalorder %s23, 1
      %p139 = por %p137, %p138
      %p140 = scmp.ne.s32.totalorder %s131, %s132
      %p141 = scmp.eq.s32.totalorder %s23, 0
      %p142 = por %p140, %p141
      %p143 = scmp.ne.s32.totalorder %s131, %s132
      %p144 = scmp.eq.s32.totalorder %s24, 1
      %p145 = por %p143, %p144
      %p147 = scmp.ne.s32.totalorder %s132, %s146
      %p148 = scmp.eq.s32.totalorder %s24, 0
      %p149 = por %p147, %p148
      %s150 = ssub.s32 %s25, %s37
      %p151 = scmp.eq.s32.totalorder %s150, 0
      %s153 = sadd.s32 %s152, 1
      %s154 = scalar_select %p151, %s152, %s153
      %p157 = pneg %p151
      %p158 = scmp.eq.s32.totalorder %s18, 1
      %p159 = por %p157, %p158
      %p160 = scmp.ne.s32.totalorder %s152, %s155
      %p161 = scmp.eq.s32.totalorder %s18, 0
      %p162 = por %p160, %p161
      %p163 = scmp.ne.s32.totalorder %s152, %s155
      %p164 = scmp.eq.s32.totalorder %s23, 1
      %p165 = por %p163, %p164
      %p166 = scmp.ne.s32.totalorder %s155, %s156
      %p167 = scmp.eq.s32.totalorder %s23, 0
      %p168 = por %p166, %p167
      %p169 = scmp.ne.s32.totalorder %s155, %s156
      %p170 = scmp.eq.s32.totalorder %s24, 1
      %p171 = por %p169, %p170
      %p173 = scmp.ne.s32.totalorder %s156, %s172
      %p174 = scmp.eq.s32.totalorder %s24, 0
      %p175 = por %p173, %p174
      %p176 = scmp.le.s32.totalorder 1, %s18
      %p177 = scmp.lt.s32.totalorder %s18, 3
      %p178 = pnand %p176, %p177
      %p179 = pneg %p178
      // Predicated region
      $region9: #{sublayer_forward.1} parent=5 // pred_check
        _
      $region10: #{sublayer_forward.1} parent=5 // pred_check_branch
        %181 = sbr.rel (%p178) target = $region12
      $region11: #{sublayer_forward.1} parent=5 // pred_region
        %s182 = ssub.s32 %s18, 1
        // Predicated region
        $region13: #{sublayer_forward.1} parent=11 // pred_check
          %p183 = pneg %p79
        $region14: #{sublayer_forward.1} parent=11 // pred_check_branch
          %185 = sbr.rel (%p183) target = $region16
        $region15: #{sublayer_forward.1} parent=11 // pred_region
          %s187 = ssub.s32 2048, 2048
          %188 = vsyncadd [#allocation6], %s187
          %s189 = sshll.u32 [#allocation5], 4
          %s190 = int_to_ptr.vmem [resolvable:$true] %s189
          %195 = dma.hbm_to_vmem [thread:$0]  %s1, 2048, %s190, [#allocation6], 128, 128, 8
        $region16: #{sublayer_forward.1} parent=11 // pred_fallthru
          _
        // Predicated region
        $region17: #{sublayer_forward.1} parent=11 // pred_check
          %p196 = pneg %p100
        $region18: #{sublayer_forward.1} parent=11 // pred_check_branch
          %198 = sbr.rel (%p196) target = $region20
        $region19: #{sublayer_forward.1} parent=11 // pred_region
          _
        $region20: #{sublayer_forward.1} parent=11 // pred_fallthru
          _
        // Predicated region
        $region21: #{sublayer_forward.1} parent=11 // pred_check
          %p199 = pneg %p121
        $region22: #{sublayer_forward.1} parent=11 // pred_check_branch
          %201 = sbr.rel (%p199) target = $region24
        $region23: #{sublayer_forward.1} parent=11 // pred_region
          _
        $region24: #{sublayer_forward.1} parent=11 // pred_fallthru
          _
        // Predicated region
        $region25: #{sublayer_forward.1} parent=11 // pred_check
          %p202 = pneg %p142
        $region26: #{sublayer_forward.1} parent=11 // pred_check_branch
          %204 = sbr.rel (%p202) target = $region28
        $region27: #{sublayer_forward.1} parent=11 // pred_region
          _
        $region28: #{sublayer_forward.1} parent=11 // pred_fallthru
          _
      $region12: #{sublayer_forward.1} parent=5 // pred_fallthru
        _
      %p205 = scmp.lt.s32.totalorder %s18, 2
      // Predicated region
      $region29: #{sublayer_forward.1} parent=5 // pred_check
        %p206 = pneg %p205
      $region30: #{sublayer_forward.1} parent=5 // pred_check_branch
        %208 = sbr.rel (%p206) target = $region32
      $region31: #{sublayer_forward.1} parent=5 // pred_region
        // Predicated region
        $region33: #{sublayer_forward.1} parent=31 // pred_check
          %p209 = pneg %p52
        $region34: #{sublayer_forward.1} parent=31 // pred_check_branch
          %211 = sbr.rel (%p209) target = $region36
        $region35: #{sublayer_forward.1} parent=31 // pred_region
          %s212 = sand.u32 %s42, 1
          %s213 = scalar_lea.sflag [#allocation3], %s212
          %s214 = sand.u32 %s42, 1
          %s215 = smul.addr %s214, 8
          %s216 = scalar_lea.vmem [#allocation2], %s215
          %s218 = ssub.s32 128, 128
          %219 = vsyncadd %s213, %s218
          %s220 = sadd.s32 %s26, %s25
          %s221 = smul.addr %s220, 128
          %s222 = scalar_lea.hbm %s0, %s221
          %s224 = sshll.u32 %s216, 4
          %s225 = int_to_ptr.vmem [resolvable:$true] %s224
          %227 = dma.hbm_to_vmem [thread:$0]  %s222, 128, %s225, %s213
        $region36: #{sublayer_forward.1} parent=31 // pred_fallthru
          _
      $region32: #{sublayer_forward.1} parent=5 // pred_fallthru
        _
      %p228 = scmp.le.s32.totalorder 1, %s18
      %p229 = scmp.lt.s32.totalorder %s18, 3
      %p230 = pnand %p228, %p229
      %p231 = pneg %p230
      // Predicated region
      $region37: #{sublayer_forward.1} parent=5 // pred_check
        _
      $region38: #{sublayer_forward.1} parent=5 // pred_check_branch
        %233 = sbr.rel (%p230) target = $region40
      $region39: #{sublayer_forward.1} parent=5 // pred_region
        %s234 = ssub.s32 %s18, 1
        %s235 = sand.u32 %s45, 1
        %s236 = scalar_lea.sflag [#allocation3], %s235
        %s237 = sand.u32 %s45, 1
        %s238 = smul.addr %s237, 8
        %s239 = scalar_lea.vmem [#allocation2], %s238
        // Predicated region
        $region41: #{sublayer_forward.1} parent=39 // pred_check
          %p240 = pneg %p58
        $region42: #{sublayer_forward.1} parent=39 // pred_check_branch
          %242 = sbr.rel (%p240) target = $region44
        $region43: #{sublayer_forward.1} parent=39 // pred_region
          %243 = dma.done %s236, 128
        $region44: #{sublayer_forward.1} parent=39 // pred_fallthru
          _
        // Predicated region
        $region45: #{sublayer_forward.1} parent=39 // pred_check
          %p244 = pneg %p79
        $region46: #{sublayer_forward.1} parent=39 // pred_check_branch
          %246 = sbr.rel (%p244) target = $region48
        $region47: #{sublayer_forward.1} parent=39 // pred_region
          %247 = dma.done [#allocation6], 2048
        $region48: #{sublayer_forward.1} parent=39 // pred_fallthru
          _
        %s248 = sand.u32 %s45, 1
        %s249 = scalar_lea.sflag [#allocation3], %s248
        %s250 = sand.u32 %s45, 1
        %s251 = smul.addr %s250, 8
        %s252 = scalar_lea.vmem [#allocation2], %s251
        %p253 = pneg %p58
        %p254 = pneg %p55
        %p255 = pneg %p79
        %p256 = pneg %p76
        %p257 = pneg %p100
        %p258 = pneg %p97
        %p259 = pneg %p121
        %p260 = pneg %p118
        %p261 = pneg %p142
        %p262 = pneg %p139
        %p263 = pneg %p168
        %p264 = pneg %p165
        %s265 = sand.u32 %s155, 1
        %s266 = scalar_lea.sflag [#allocation4], %s265
        %s267 = sand.u32 %s155, 1
        %s268 = smul.addr %s267, 8
        %s269 = scalar_lea.vmem [#allocation7], %s268
        %v270 = vld [vmem:[%s239] sm:$0xff]
        %v271 = vld [vmem:[#allocation5] sm:$0xff]
        %v272 = vld [vmem:[#allocation5 + $0x8] sm:$0xff]
        %v273 = vld [vmem:[#allocation5 + $0x10] sm:$0xff]
        %v274 = vld [vmem:[#allocation5 + $0x18] sm:$0xff]
        %v275 = vld [vmem:[#allocation5 + $0x20] sm:$0xff]
        %v276 = vld [vmem:[#allocation5 + $0x28] sm:$0xff]
        %v277 = vld [vmem:[#allocation5 + $0x30] sm:$0xff]
        %v278 = vld [vmem:[#allocation5 + $0x38] sm:$0xff]
        %v279 = vld [vmem:[#allocation5 + $0x40] sm:$0xff]
        %v280 = vld [vmem:[#allocation5 + $0x48] sm:$0xff]
        %v281 = vld [vmem:[#allocation5 + $0x50] sm:$0xff]
        %v282 = vld [vmem:[#allocation5 + $0x58] sm:$0xff]
        %v283 = vld [vmem:[#allocation5 + $0x60] sm:$0xff]
        %v284 = vld [vmem:[#allocation5 + $0x68] sm:$0xff]
        %v285 = vld [vmem:[#allocation5 + $0x70] sm:$0xff]
        %v286 = vld [vmem:[#allocation5 + $0x78] sm:$0xff]
        %287 = vmatprep.subr.mxu0 0.0
        %288 = vmatpush1.msra.mxu0 %v286
        %289 = vmatprep.subr.mxu0 0.0
        %290 = vmatpush1.msra.mxu0 %v285
        %291 = vmatprep.subr.mxu0 0.0
        %292 = vmatpush1.msra.mxu0 %v284
        %293 = vmatprep.subr.mxu0 0.0
        %294 = vmatpush1.msra.mxu0 %v283
        %295 = vmatprep.subr.mxu0 0.0
        %296 = vmatpush1.msra.mxu0 %v282
        %297 = vmatprep.subr.mxu0 0.0
        %298 = vmatpush1.msra.mxu0 %v281
        %299 = vmatprep.subr.mxu0 0.0
        %300 = vmatpush1.msra.mxu0 %v280
        %301 = vmatprep.subr.mxu0 0.0
        %302 = vmatpush1.msra.mxu0 %v279
        %303 = vmatprep.subr.mxu0 0.0
        %304 = vmatpush1.msra.mxu0 %v278
        %305 = vmatprep.subr.mxu0 0.0
        %306 = vmatpush1.msra.mxu0 %v277
        %307 = vmatprep.subr.mxu0 0.0
        %308 = vmatpush1.msra.mxu0 %v276
        %309 = vmatprep.subr.mxu0 0.0
        %310 = vmatpush1.msra.mxu0 %v275
        %311 = vmatprep.subr.mxu0 0.0
        %312 = vmatpush1.msra.mxu0 %v274
        %313 = vmatprep.subr.mxu0 0.0
        %314 = vmatpush1.msra.mxu0 %v273
        %315 = vmatprep.subr.mxu0 0.0
        %316 = vmatpush1.msra.mxu0 %v272
        %317 = vmatprep.subr.mxu0 0.0
        %318 = vmatpush1.msra.mxu0 %v271
        %319 = vmatprep.subr.mxu0 0.0
        %320 = vmatpush2.msra.mxu0 0.0
        %321 = vmatprep.subr.mxu0 0.0
        %322 = vmatpush2.msra.mxu0 0.0
        %323 = vmatprep.subr.mxu0 0.0
        %324 = vmatpush2.msra.mxu0 0.0
        %325 = vmatprep.subr.mxu0 0.0
        %326 = vmatpush2.msra.mxu0 0.0
        %327 = vmatprep.subr.mxu0 0.0
        %328 = vmatpush2.msra.mxu0 0.0
        %329 = vmatprep.subr.mxu0 0.0
        %330 = vmatpush2.msra.mxu0 0.0
        %331 = vmatprep.subr.mxu0 0.0
        %332 = vmatpush2.msra.mxu0 0.0
        %333 = vmatprep.subr.mxu0 0.0
        %334 = vmatpush2.msra.mxu0 0.0
        %335 = vmatprep.subr.mxu0 0.0
        %336 = vmatpush2.msra.mxu0 0.0
        %337 = vmatprep.subr.mxu0 0.0
        %338 = vmatpush2.msra.mxu0 0.0
        %339 = vmatprep.subr.mxu0 0.0
        %340 = vmatpush2.msra.mxu0 0.0
        %341 = vmatprep.subr.mxu0 0.0
        %342 = vmatpush2.msra.mxu0 0.0
        %343 = vmatprep.subr.mxu0 0.0
        %344 = vmatpush2.msra.mxu0 0.0
        %345 = vmatprep.subr.mxu0 0.0
        %346 = vmatpush2.msra.mxu0 0.0
        %347 = vmatprep.subr.mxu0 0.0
        %348 = vmatpush2.msra.mxu0 0.0
        %349 = vmatprep.subr.mxu0 0.0
        %350 = vmatpush2.msra.mxu0 0.0
        %351 = vmatprep.mubr.f32.mxu0 0.0
        %352 = vmatmul.mubr.f32.gmra.mxu0 %v270
        %v353 = vpop.f32.mrf.mxu0
        %v354 = vadd.f32 %v270, %v353
        %v355 = vpop.f32.mrf.mxu0
        %356 = vdwg.mxu0
        %v357 = vld [vmem:[%s2] sm:$0x1]
        %v359 = vlaneseq
        %v360 = vshrl.u32 %v359, 7
        %v361 = vsub.s32 0, %v360
        %v362 = vrot.slane %v357, %v361
        %v364 = vadd.f32 %v354, %v362
        %365 = vadd.xlane.f32.xlu0 %v364
        %v366 = vpop.xlane.xlu0 %365
        %v367 = vmul.f32 %v366, 0.0078125
        %v368 = vsub.f32 %v364, %v367
        %v369 = vmul.f32 %v368, %v368
        %370 = vadd.xlane.f32.xlu0 %v369
        %v371 = vpop.xlane.xlu0 %370
        %v372 = vmul.f32 %v371, 0.0078125
        %v373 = vadd.f32 %v372, 1e-05
        %v374 = vrsqrt.pop %v373
        %v375 = vmul.f32 %v368, %v374
        %v376 = vld [vmem:[%s3] sm:$0x1]
        %v378 = vlaneseq
        %v379 = vshrl.u32 %v378, 7
        %v380 = vsub.s32 0, %v379
        %v381 = vrot.slane %v376, %v380
        %v383 = vmul.f32 %v375, %v381
        %v384 = vld [vmem:[%s4] sm:$0x1]
        %v386 = vlaneseq
        %v387 = vshrl.u32 %v386, 7
        %v388 = vsub.s32 0, %v387
        %v389 = vrot.slane %v384, %v388
        %v391 = vadd.f32 %v383, %v389
        %392 = vst [vmem:[%s269] sm:$0xff] %v391
        %s393 = sand.u32 %s155, 1
        %s394 = scalar_lea.sflag [#allocation4], %s393
        %s395 = sand.u32 %s155, 1
        %s396 = smul.addr %s395, 8
        %s397 = scalar_lea.vmem [#allocation7], %s396
        // Predicated region
        $region49: #{sublayer_forward.1} parent=39 // pred_check
          %p398 = pneg %p165
        $region50: #{sublayer_forward.1} parent=39 // pred_check_branch
          %400 = sbr.rel (%p398) target = $region52
        $region51: #{sublayer_forward.1} parent=39 // pred_region
          %s402 = ssub.s32 128, 128
          %403 = vsyncadd %s394, %s402
          %s404 = smul.addr %s27, 128
          %s405 = scalar_lea.hbm %s5, %s404
          %s407 = sshll.u32 %s397, 4
          %s408 = int_to_ptr.vmem [resolvable:$true] %s407
          %410 = dma.vmem_to_hbm [thread:$0]  %s408, 128, %s405, %s394
        $region52: #{sublayer_forward.1} parent=39 // pred_fallthru
          _
      $region40: #{sublayer_forward.1} parent=5 // pred_fallthru
        _
      %p411 = scmp.le.s32.totalorder 2, %s18
      // Predicated region
      $region53: #{sublayer_forward.1} parent=5 // pred_check
        %p412 = pneg %p411
      $region54: #{sublayer_forward.1} parent=5 // pred_check_branch
        %414 = sbr.rel (%p412) target = $region56
      $region55: #{sublayer_forward.1} parent=5 // pred_region
        %s415 = ssub.s32 %s18, 2
        // Predicated region
        $region57: #{sublayer_forward.1} parent=55 // pred_check
          %p416 = pneg %p171
        $region58: #{sublayer_forward.1} parent=55 // pred_check_branch
          %418 = sbr.rel (%p416) target = $region60
        $region59: #{sublayer_forward.1} parent=55 // pred_region
          %s419 = sand.u32 %s156, 1
          %s420 = scalar_lea.sflag [#allocation4], %s419
          %s421 = sand.u32 %s156, 1
          %s422 = smul.addr %s421, 8
          %s423 = scalar_lea.vmem [#allocation7], %s422
          %424 = dma.done %s420, 128
        $region60: #{sublayer_forward.1} parent=55 // pred_fallthru
          _
      $region56: #{sublayer_forward.1} parent=5 // pred_fallthru
        _
    $region6: #{sublayer_forward.1} parent=1 // loop_footer
      %s22 = sadd.s32 1, %s18
    $region7: #{sublayer_forward.1} parent=1 // loop_footer_branch
      %17 = sbr.rel target = $region3
    $region8: #{sublayer_forward.1} parent=1 // loop_exit
      _
    %425 = vsyncpa [#allocation3], 1
    %s426 = scalar_lea.sflag [#allocation3], 1
    %427 = vsyncpa %s426, 1
    %428 = vsyncpa [#allocation6], 1
    %429 = vsyncpa [#allocation4], 1
    %s430 = scalar_lea.sflag [#allocation4], 1
    %431 = vsyncpa %s430, 1

</llo_original>
